<compile_context>
chip_gen: v7x
topology: tpu7x:2x2x1
jax: 0.10.0
libtpu: 0.0.40
codegen_flags: <defaults>
</compile_context>

<pallas_src>
import functools

import jax
import jax.numpy as jnp
from jax import lax
from jax.experimental import pallas as pl
from jax.experimental.pallas import tpu as pltpu

EPSILON = 1e-10


def _pl_loss_kernel(y_pred_ref, y_true_ref, ll_ref, alpha_sc, denom_sc, *, block_rows):
    # ---- dense block-level prep (EUP exp at full sublane/lane density) ----
    y_pred = y_pred_ref[...]                                    # (TB, N)
    row_max = jnp.max(y_pred, axis=-1, keepdims=True)           # (TB, 1)
    shifted = y_pred - row_max                                  # (TB, N)
    alpha_sc[...] = jnp.exp(shifted)                            # (TB, N)

    # ---- per-row O(N^2) masked suffix-sum (VPU: fused cmp+select, sublane reduce) ----
    # denom[b, k] = sum_m alpha[b, m] * [y_true[b, m] >= y_true[b, k]]
    # TODO(synk): for very large N (>= ~1024), chunk the k (lane) axis of this masked
    # reduction to bound the per-row (N, N) temporary.
    def row_body(r, carry):
        yt = y_true_ref[pl.ds(r, 1), :]                         # (1, N)
        al = alpha_sc[pl.ds(r, 1), :]                           # (1, N)
        masked = jnp.where(yt.T >= yt, al.T, 0.0)               # (N, N): m on sublanes, k on lanes
        denom_sc[pl.ds(r, 1), :] = jnp.sum(masked, axis=0, keepdims=True)  # (1, N) lane-dense
        return carry

    lax.fori_loop(0, block_rows, row_body, 0, unroll=8)

    # ---- dense block-level finish (EUP log + lane reduction) ----
    log_den = jnp.log(denom_sc[...] + EPSILON)                  # (TB, N)
    ll_ref[...] = jnp.sum(shifted - log_den, axis=-1, keepdims=True)  # (TB, 1)


def _choose_block_rows(B, N):
    # Bytes resident per grid step (pipelined): 2 inputs x 2 buffers x TB*N*4
    # plus 2 scratches x TB*N*4  = 24 * TB * N.  Keep under ~6 MiB so it fits the
    # default scoped VMEM on v5e (16 MiB) and v7x (32 MiB of 64 MiB physical).
    budget = 6 * 1024 * 1024
    tb = max(8, min(512, budget // (24 * max(N, 1))))
    tb = (tb // 8) * 8                      # sublane-aligned
    b_round8 = ((B + 7) // 8) * 8
    return min(tb, b_round8)


def plackett_luce_loss(y_pred, y_true):
    """y_pred, y_true: (B, N). Returns scalar float32 Plackett-Luce NLL (batch mean)."""
    assert y_pred.shape == y_true.shape and y_pred.ndim == 2
    B, N = y_pred.shape
    y_pred = y_pred.astype(jnp.float32)
    y_true = y_true.astype(jnp.float32)

    tb = _choose_block_rows(B, N)
    num_blocks = pl.cdiv(B, tb)
    b_pad = num_blocks * tb
    if b_pad != B:
        pad = b_pad - B
        # Padded rows produce finite garbage; the wrapper slices them away before reducing.
        y_pred = jnp.pad(y_pred, ((0, pad), (0, 0)))
        y_true = jnp.pad(y_true, ((0, pad), (0, 0)))

    row_ll = pl.pallas_call(
        functools.partial(_pl_loss_kernel, block_rows=tb),
        out_shape=jax.ShapeDtypeStruct((b_pad, 1), jnp.float32),
        grid_spec=pltpu.PrefetchScalarGridSpec(
            num_scalar_prefetch=0,
            grid=(num_blocks,),
            in_specs=[
                pl.BlockSpec((tb, N), lambda i: (i, 0)),
                pl.BlockSpec((tb, N), lambda i: (i, 0)),
            ],
            out_specs=pl.BlockSpec((tb, 1), lambda i: (i, 0)),
            scratch_shapes=[
                pltpu.VMEM((tb, N), jnp.float32),   # alpha = exp(y_pred - rowmax)
                pltpu.VMEM((tb, N), jnp.float32),   # denom (masked suffix sums)
            ],
        ),
        compiler_params=pltpu.CompilerParams(
            dimension_semantics=("parallel",),      # independent per-block rows -> 2 TCs on v7x
            vmem_limit_bytes=32 * 1024 * 1024,
        ),
    )(y_pred, y_true)

    return -jnp.sum(row_ll[:B, 0]) / B


def _reference_loss(y_pred, y_true, eps=EPSILON):
    """Plain-JAX transcription of the PyTorch module (argsort/gather/flip/cumsum)."""
    idx = jnp.argsort(y_true, axis=-1)
    yps = jnp.take_along_axis(y_pred, idx, axis=-1)
    alpha = jnp.exp(yps)
    flipped = jnp.flip(alpha, axis=-1)
    csum = jnp.cumsum(flipped, axis=-1)
    log_den = jnp.flip(jnp.log(csum + eps), axis=-1)
    ll = jnp.sum(yps - log_den, axis=1)
    return -jnp.mean(ll)


if __name__ == "__main__":
    B, N = 4, 16
    key = jax.random.PRNGKey(0)
    k_pred, k_perm = jax.random.split(key)

    y_pred = jax.random.normal(k_pred, (B, N), dtype=jnp.float32)
    # Ranking labels: a distinct permutation of 0..N-1 per row (smaller = ranked higher).
    y_true = jnp.stack(
        [jax.random.permutation(jax.random.fold_in(k_perm, b), N) for b in range(B)]
    ).astype(jnp.float32)

    loss = plackett_luce_loss(y_pred, y_true)
    loss = jax.block_until_ready(loss)

    ref = jax.block_until_ready(_reference_loss(y_pred, y_true))
    assert jnp.allclose(loss, ref, atol=1e-4, rtol=1e-4), (loss, ref)

    print("KERNEL_OK")
</pallas_src>

<mosaic_0001>
module attributes {stable_mosaic.version = 11 : i64} {
  func.func @_pl_loss_kernel(%arg0: i32, %arg1: memref<8x16xf32, #tpu.memory_space<vmem>>, %arg2: memref<8x16xf32, #tpu.memory_space<vmem>>, %arg3: memref<8x1xf32, #tpu.memory_space<vmem>>, %arg4: memref<8x16xf32, #tpu.memory_space<vmem>>, %arg5: memref<8x16xf32, #tpu.memory_space<vmem>>) attributes {dimension_semantics = [#tpu.dimension_semantics<parallel>], iteration_bounds = array<i64: 1>, scalar_prefetch = 0 : i64, scratch_operands = 2 : i64, tpu.core_type = #tpu.core_type<tc>, window_params = [{transform_indices = @transform_0, window_bounds = array<i64: 8, 16>}, {transform_indices = @transform_1, window_bounds = array<i64: 8, 16>}, {transform_indices = @transform_2, window_bounds = array<i64: 8, 1>}]} {
    %c0 = arith.constant 0 : index
    %c0_0 = arith.constant 0 : index
    %0 = vector.load %arg1[%c0, %c0_0] : memref<8x16xf32, #tpu.memory_space<vmem>>, vector<8x16xf32>
    %cst = arith.constant dense<0xFF800000> : vector<8xf32>
    %1 = vector.multi_reduction <maximumf>, %0, %cst [1] : vector<8x16xf32> to vector<8xf32>
    %2 = vector.shape_cast %1 : vector<8xf32> to vector<8x1xf32>
    %3 = vector.broadcast %2 : vector<8x1xf32> to vector<8x16xf32>
    %4 = arith.subf %0, %3 : vector<8x16xf32>
    %5 = math.exp %4 : vector<8x16xf32>
    %c0_1 = arith.constant 0 : index
    %c0_2 = arith.constant 0 : index
    %6 = vector.load %arg4[%c0_1, %c0_2] : memref<8x16xf32, #tpu.memory_space<vmem>>, vector<8x16xf32>
    tpu.vector_store %arg4[%c0_1, %c0_2], %5 {strides = array<i32>} : memref<8x16xf32, #tpu.memory_space<vmem>>, vector<8x16xf32>,
    %c0_i32 = arith.constant 0 : i32
    %7 = arith.index_cast %c0_i32 : i32 to index
    %c0_3 = arith.constant 0 : index
    %8 = vector.load %arg2[%7, %c0_3] : memref<8x16xf32, #tpu.memory_space<vmem>>, vector<1x16xf32>
    %9 = arith.index_cast %c0_i32 : i32 to index
    %c0_4 = arith.constant 0 : index
    %10 = vector.load %arg4[%9, %c0_4] : memref<8x16xf32, #tpu.memory_space<vmem>>, vector<1x16xf32>
    %11 = tpu.transpose %8, [1, 0] : vector<1x16xf32> -> vector<16x1xf32>
    %12 = vector.broadcast %11 : vector<16x1xf32> to vector<16x16xf32>
    %13 = vector.broadcast %8 : vector<1x16xf32> to vector<16x16xf32>
    %14 = arith.cmpf oge, %12, %13 : vector<16x16xf32>
    %15 = tpu.transpose %10, [1, 0] : vector<1x16xf32> -> vector<16x1xf32>
    %cst_5 = arith.constant 0.000000e+00 : f32
    %16 = vector.shape_cast %15 : vector<16x1xf32> to vector<16x1xf32>
    %17 = vector.broadcast %16 : vector<16x1xf32> to vector<16x16xf32>
    %18 = vector.broadcast %cst_5 : f32 to vector<16x16xf32>
    %19 = arith.select %14, %17, %18 : vector<16x16xi1>, vector<16x16xf32>
    %cst_6 = arith.constant dense<0.000000e+00> : vector<16xf32>
    %20 = vector.multi_reduction <add>, %19, %cst_6 [0] : vector<16x16xf32> to vector<16xf32>
    %21 = vector.shape_cast %20 : vector<16xf32> to vector<1x16xf32>
    %22 = arith.index_cast %c0_i32 : i32 to index
    %c0_7 = arith.constant 0 : index
    %23 = vector.load %arg5[%22, %c0_7] : memref<8x16xf32, #tpu.memory_space<vmem>>, vector<1x16xf32>
    tpu.vector_store %arg5[%22, %c0_7], %21 {strides = array<i32>} : memref<8x16xf32, #tpu.memory_space<vmem>>, vector<1x16xf32>,
    %c1_i32 = arith.constant 1 : i32
    %24 = arith.index_cast %c1_i32 : i32 to index
    %c0_8 = arith.constant 0 : index
    %25 = vector.load %arg2[%24, %c0_8] : memref<8x16xf32, #tpu.memory_space<vmem>>, vector<1x16xf32>
    %26 = arith.index_cast %c1_i32 : i32 to index
    %c0_9 = arith.constant 0 : index
    %27 = vector.load %arg4[%26, %c0_9] : memref<8x16xf32, #tpu.memory_space<vmem>>, vector<1x16xf32>
    %28 = tpu.transpose %25, [1, 0] : vector<1x16xf32> -> vector<16x1xf32>
    %29 = vector.broadcast %28 : vector<16x1xf32> to vector<16x16xf32>
    %30 = vector.broadcast %25 : vector<1x16xf32> to vector<16x16xf32>
    %31 = arith.cmpf oge, %29, %30 : vector<16x16xf32>
    %32 = tpu.transpose %27, [1, 0] : vector<1x16xf32> -> vector<16x1xf32>
    %cst_10 = arith.constant 0.000000e+00 : f32
    %33 = vector.shape_cast %32 : vector<16x1xf32> to vector<16x1xf32>
    %34 = vector.broadcast %33 : vector<16x1xf32> to vector<16x16xf32>
    %35 = vector.broadcast %cst_10 : f32 to vector<16x16xf32>
    %36 = arith.select %31, %34, %35 : vector<16x16xi1>, vector<16x16xf32>
    %cst_11 = arith.constant dense<0.000000e+00> : vector<16xf32>
    %37 = vector.multi_reduction <add>, %36, %cst_11 [0] : vector<16x16xf32> to vector<16xf32>
    %38 = vector.shape_cast %37 : vector<16xf32> to vector<1x16xf32>
    %39 = arith.index_cast %c1_i32 : i32 to index
    %c0_12 = arith.constant 0 : index
    %40 = vector.load %arg5[%39, %c0_12] : memref<8x16xf32, #tpu.memory_space<vmem>>, vector<1x16xf32>
    tpu.vector_store %arg5[%39, %c0_12], %38 {strides = array<i32>} : memref<8x16xf32, #tpu.memory_space<vmem>>, vector<1x16xf32>,
    %c2_i32 = arith.constant 2 : i32
    %41 = arith.index_cast %c2_i32 : i32 to index
    %c0_13 = arith.constant 0 : index
    %42 = vector.load %arg2[%41, %c0_13] : memref<8x16xf32, #tpu.memory_space<vmem>>, vector<1x16xf32>
    %43 = arith.index_cast %c2_i32 : i32 to index
    %c0_14 = arith.constant 0 : index
    %44 = vector.load %arg4[%43, %c0_14] : memref<8x16xf32, #tpu.memory_space<vmem>>, vector<1x16xf32>
    %45 = tpu.transpose %42, [1, 0] : vector<1x16xf32> -> vector<16x1xf32>
    %46 = vector.broadcast %45 : vector<16x1xf32> to vector<16x16xf32>
    %47 = vector.broadcast %42 : vector<1x16xf32> to vector<16x16xf32>
    %48 = arith.cmpf oge, %46, %47 : vector<16x16xf32>
    %49 = tpu.transpose %44, [1, 0] : vector<1x16xf32> -> vector<16x1xf32>
    %cst_15 = arith.constant 0.000000e+00 : f32
    %50 = vector.shape_cast %49 : vector<16x1xf32> to vector<16x1xf32>
    %51 = vector.broadcast %50 : vector<16x1xf32> to vector<16x16xf32>
    %52 = vector.broadcast %cst_15 : f32 to vector<16x16xf32>
    %53 = arith.select %48, %51, %52 : vector<16x16xi1>, vector<16x16xf32>
    %cst_16 = arith.constant dense<0.000000e+00> : vector<16xf32>
    %54 = vector.multi_reduction <add>, %53, %cst_16 [0] : vector<16x16xf32> to vector<16xf32>
    %55 = vector.shape_cast %54 : vector<16xf32> to vector<1x16xf32>
    %56 = arith.index_cast %c2_i32 : i32 to index
    %c0_17 = arith.constant 0 : index
    %57 = vector.load %arg5[%56, %c0_17] : memref<8x16xf32, #tpu.memory_space<vmem>>, vector<1x16xf32>
    tpu.vector_store %arg5[%56, %c0_17], %55 {strides = array<i32>} : memref<8x16xf32, #tpu.memory_space<vmem>>, vector<1x16xf32>,
    %c3_i32 = arith.constant 3 : i32
    %58 = arith.index_cast %c3_i32 : i32 to index
    %c0_18 = arith.constant 0 : index
    %59 = vector.load %arg2[%58, %c0_18] : memref<8x16xf32, #tpu.memory_space<vmem>>, vector<1x16xf32>
    %60 = arith.index_cast %c3_i32 : i32 to index
    %c0_19 = arith.constant 0 : index
    %61 = vector.load %arg4[%60, %c0_19] : memref<8x16xf32, #tpu.memory_space<vmem>>, vector<1x16xf32>
    %62 = tpu.transpose %59, [1, 0] : vector<1x16xf32> -> vector<16x1xf32>
    %63 = vector.broadcast %62 : vector<16x1xf32> to vector<16x16xf32>
    %64 = vector.broadcast %59 : vector<1x16xf32> to vector<16x16xf32>
    %65 = arith.cmpf oge, %63, %64 : vector<16x16xf32>
    %66 = tpu.transpose %61, [1, 0] : vector<1x16xf32> -> vector<16x1xf32>
    %cst_20 = arith.constant 0.000000e+00 : f32
    %67 = vector.shape_cast %66 : vector<16x1xf32> to vector<16x1xf32>
    %68 = vector.broadcast %67 : vector<16x1xf32> to vector<16x16xf32>
    %69 = vector.broadcast %cst_20 : f32 to vector<16x16xf32>
    %70 = arith.select %65, %68, %69 : vector<16x16xi1>, vector<16x16xf32>
    %cst_21 = arith.constant dense<0.000000e+00> : vector<16xf32>
    %71 = vector.multi_reduction <add>, %70, %cst_21 [0] : vector<16x16xf32> to vector<16xf32>
    %72 = vector.shape_cast %71 : vector<16xf32> to vector<1x16xf32>
    %73 = arith.index_cast %c3_i32 : i32 to index
    %c0_22 = arith.constant 0 : index
    %74 = vector.load %arg5[%73, %c0_22] : memref<8x16xf32, #tpu.memory_space<vmem>>, vector<1x16xf32>
    tpu.vector_store %arg5[%73, %c0_22], %72 {strides = array<i32>} : memref<8x16xf32, #tpu.memory_space<vmem>>, vector<1x16xf32>,
    %c4_i32 = arith.constant 4 : i32
    %75 = arith.index_cast %c4_i32 : i32 to index
    %c0_23 = arith.constant 0 : index
    %76 = vector.load %arg2[%75, %c0_23] : memref<8x16xf32, #tpu.memory_space<vmem>>, vector<1x16xf32>
    %77 = arith.index_cast %c4_i32 : i32 to index
    %c0_24 = arith.constant 0 : index
    %78 = vector.load %arg4[%77, %c0_24] : memref<8x16xf32, #tpu.memory_space<vmem>>, vector<1x16xf32>
    %79 = tpu.transpose %76, [1, 0] : vector<1x16xf32> -> vector<16x1xf32>
    %80 = vector.broadcast %79 : vector<16x1xf32> to vector<16x16xf32>
    %81 = vector.broadcast %76 : vector<1x16xf32> to vector<16x16xf32>
    %82 = arith.cmpf oge, %80, %81 : vector<16x16xf32>
    %83 = tpu.transpose %78, [1, 0] : vector<1x16xf32> -> vector<16x1xf32>
    %cst_25 = arith.constant 0.000000e+00 : f32
    %84 = vector.shape_cast %83 : vector<16x1xf32> to vector<16x1xf32>
    %85 = vector.broadcast %84 : vector<16x1xf32> to vector<16x16xf32>
    %86 = vector.broadcast %cst_25 : f32 to vector<16x16xf32>
    %87 = arith.select %82, %85, %86 : vector<16x16xi1>, vector<16x16xf32>
    %cst_26 = arith.constant dense<0.000000e+00> : vector<16xf32>
    %88 = vector.multi_reduction <add>, %87, %cst_26 [0] : vector<16x16xf32> to vector<16xf32>
    %89 = vector.shape_cast %88 : vector<16xf32> to vector<1x16xf32>
    %90 = arith.index_cast %c4_i32 : i32 to index
    %c0_27 = arith.constant 0 : index
    %91 = vector.load %arg5[%90, %c0_27] : memref<8x16xf32, #tpu.memory_space<vmem>>, vector<1x16xf32>
    tpu.vector_store %arg5[%90, %c0_27], %89 {strides = array<i32>} : memref<8x16xf32, #tpu.memory_space<vmem>>, vector<1x16xf32>,
    %c5_i32 = arith.constant 5 : i32
    %92 = arith.index_cast %c5_i32 : i32 to index
    %c0_28 = arith.constant 0 : index
    %93 = vector.load %arg2[%92, %c0_28] : memref<8x16xf32, #tpu.memory_space<vmem>>, vector<1x16xf32>
    %94 = arith.index_cast %c5_i32 : i32 to index
    %c0_29 = arith.constant 0 : index
    %95 = vector.load %arg4[%94, %c0_29] : memref<8x16xf32, #tpu.memory_space<vmem>>, vector<1x16xf32>
    %96 = tpu.transpose %93, [1, 0] : vector<1x16xf32> -> vector<16x1xf32>
    %97 = vector.broadcast %96 : vector<16x1xf32> to vector<16x16xf32>
    %98 = vector.broadcast %93 : vector<1x16xf32> to vector<16x16xf32>
    %99 = arith.cmpf oge, %97, %98 : vector<16x16xf32>
    %100 = tpu.transpose %95, [1, 0] : vector<1x16xf32> -> vector<16x1xf32>
    %cst_30 = arith.constant 0.000000e+00 : f32
    %101 = vector.shape_cast %100 : vector<16x1xf32> to vector<16x1xf32>
    %102 = vector.broadcast %101 : vector<16x1xf32> to vector<16x16xf32>
    %103 = vector.broadcast %cst_30 : f32 to vector<16x16xf32>
    %104 = arith.select %99, %102, %103 : vector<16x16xi1>, vector<16x16xf32>
    %cst_31 = arith.constant dense<0.000000e+00> : vector<16xf32>
    %105 = vector.multi_reduction <add>, %104, %cst_31 [0] : vector<16x16xf32> to vector<16xf32>
    %106 = vector.shape_cast %105 : vector<16xf32> to vector<1x16xf32>
    %107 = arith.index_cast %c5_i32 : i32 to index
    %c0_32 = arith.constant 0 : index
    %108 = vector.load %arg5[%107, %c0_32] : memref<8x16xf32, #tpu.memory_space<vmem>>, vector<1x16xf32>
    tpu.vector_store %arg5[%107, %c0_32], %106 {strides = array<i32>} : memref<8x16xf32, #tpu.memory_space<vmem>>, vector<1x16xf32>,
    %c6_i32 = arith.constant 6 : i32
    %109 = arith.index_cast %c6_i32 : i32 to index
    %c0_33 = arith.constant 0 : index
    %110 = vector.load %arg2[%109, %c0_33] : memref<8x16xf32, #tpu.memory_space<vmem>>, vector<1x16xf32>
    %111 = arith.index_cast %c6_i32 : i32 to index
    %c0_34 = arith.constant 0 : index
    %112 = vector.load %arg4[%111, %c0_34] : memref<8x16xf32, #tpu.memory_space<vmem>>, vector<1x16xf32>
    %113 = tpu.transpose %110, [1, 0] : vector<1x16xf32> -> vector<16x1xf32>
    %114 = vector.broadcast %113 : vector<16x1xf32> to vector<16x16xf32>
    %115 = vector.broadcast %110 : vector<1x16xf32> to vector<16x16xf32>
    %116 = arith.cmpf oge, %114, %115 : vector<16x16xf32>
    %117 = tpu.transpose %112, [1, 0] : vector<1x16xf32> -> vector<16x1xf32>
    %cst_35 = arith.constant 0.000000e+00 : f32
    %118 = vector.shape_cast %117 : vector<16x1xf32> to vector<16x1xf32>
    %119 = vector.broadcast %118 : vector<16x1xf32> to vector<16x16xf32>
    %120 = vector.broadcast %cst_35 : f32 to vector<16x16xf32>
    %121 = arith.select %116, %119, %120 : vector<16x16xi1>, vector<16x16xf32>
    %cst_36 = arith.constant dense<0.000000e+00> : vector<16xf32>
    %122 = vector.multi_reduction <add>, %121, %cst_36 [0] : vector<16x16xf32> to vector<16xf32>
    %123 = vector.shape_cast %122 : vector<16xf32> to vector<1x16xf32>
    %124 = arith.index_cast %c6_i32 : i32 to index
    %c0_37 = arith.constant 0 : index
    %125 = vector.load %arg5[%124, %c0_37] : memref<8x16xf32, #tpu.memory_space<vmem>>, vector<1x16xf32>
    tpu.vector_store %arg5[%124, %c0_37], %123 {strides = array<i32>} : memref<8x16xf32, #tpu.memory_space<vmem>>, vector<1x16xf32>,
    %c7_i32 = arith.constant 7 : i32
    %126 = arith.index_cast %c7_i32 : i32 to index
    %c0_38 = arith.constant 0 : index
    %127 = vector.load %arg2[%126, %c0_38] : memref<8x16xf32, #tpu.memory_space<vmem>>, vector<1x16xf32>
    %128 = arith.index_cast %c7_i32 : i32 to index
    %c0_39 = arith.constant 0 : index
    %129 = vector.load %arg4[%128, %c0_39] : memref<8x16xf32, #tpu.memory_space<vmem>>, vector<1x16xf32>
    %130 = tpu.transpose %127, [1, 0] : vector<1x16xf32> -> vector<16x1xf32>
    %131 = vector.broadcast %130 : vector<16x1xf32> to vector<16x16xf32>
    %132 = vector.broadcast %127 : vector<1x16xf32> to vector<16x16xf32>
    %133 = arith.cmpf oge, %131, %132 : vector<16x16xf32>
    %134 = tpu.transpose %129, [1, 0] : vector<1x16xf32> -> vector<16x1xf32>
    %cst_40 = arith.constant 0.000000e+00 : f32
    %135 = vector.shape_cast %134 : vector<16x1xf32> to vector<16x1xf32>
    %136 = vector.broadcast %135 : vector<16x1xf32> to vector<16x16xf32>
    %137 = vector.broadcast %cst_40 : f32 to vector<16x16xf32>
    %138 = arith.select %133, %136, %137 : vector<16x16xi1>, vector<16x16xf32>
    %cst_41 = arith.constant dense<0.000000e+00> : vector<16xf32>
    %139 = vector.multi_reduction <add>, %138, %cst_41 [0] : vector<16x16xf32> to vector<16xf32>
    %140 = vector.shape_cast %139 : vector<16xf32> to vector<1x16xf32>
    %141 = arith.index_cast %c7_i32 : i32 to index
    %c0_42 = arith.constant 0 : index
    %142 = vector.load %arg5[%141, %c0_42] : memref<8x16xf32, #tpu.memory_space<vmem>>, vector<1x16xf32>
    tpu.vector_store %arg5[%141, %c0_42], %140 {strides = array<i32>} : memref<8x16xf32, #tpu.memory_space<vmem>>, vector<1x16xf32>,
    %c8_i32 = arith.constant 8 : i32
    %c0_43 = arith.constant 0 : index
    %c0_44 = arith.constant 0 : index
    %143 = vector.load %arg5[%c0_43, %c0_44] : memref<8x16xf32, #tpu.memory_space<vmem>>, vector<8x16xf32>
    %cst_45 = arith.constant 1.000000e-10 : f32
    %144 = vector.broadcast %cst_45 : f32 to vector<8x16xf32>
    %145 = arith.addf %143, %144 : vector<8x16xf32>
    %146 = math.log %145 : vector<8x16xf32>
    %147 = arith.subf %4, %146 : vector<8x16xf32>
    %cst_46 = arith.constant dense<0.000000e+00> : vector<8xf32>
    %148 = vector.multi_reduction <add>, %147, %cst_46 [1] : vector<8x16xf32> to vector<8xf32>
    %149 = vector.shape_cast %148 : vector<8xf32> to vector<8x1xf32>
    %c0_47 = arith.constant 0 : index
    %c0_48 = arith.constant 0 : index
    %150 = vector.load %arg3[%c0_47, %c0_48] : memref<8x1xf32, #tpu.memory_space<vmem>>, vector<8x1xf32>
    tpu.vector_store %arg3[%c0_47, %c0_48], %149 {strides = array<i32>} : memref<8x1xf32, #tpu.memory_space<vmem>>, vector<8x1xf32>,
    return
  }
  func.func @transform_0(%arg0: i32) -> (i32, i32) {
    %c0_i32 = arith.constant 0 : i32
    %c0_i32_0 = arith.constant 0 : i32
    return %arg0, %c0_i32 : i32, i32
  }
  func.func @transform_1(%arg0: i32) -> (i32, i32) {
    %c0_i32 = arith.constant 0 : i32
    %c0_i32_0 = arith.constant 0 : i32
    return %arg0, %c0_i32 : i32, i32
  }
  func.func @transform_2(%arg0: i32) -> (i32, i32) {
    %c0_i32 = arith.constant 0 : i32
    %c0_i32_0 = arith.constant 0 : i32
    return %arg0, %c0_i32 : i32, i32
  }
}

</mosaic_0001>

<llo_original>
// kernel: tpu_custom_call.1
$region0: #{tpu_custom_call.1}
  #allocation0 [shape = 'u32[]', space=smem, size = 0x4, offset = 0x4, fixed_abs, tag = 'smem constant byte address 0x4 - core index']
  #allocation1 [shape = 'u32[144,128]{1,0:T(1,128)}', space=vmem, size = 0x12000, scoped, tag = 'internal scratch']
  #allocation2 [shape = 'f32[8,16]{1,0:T(8,128)}', space=vmem, size = 0x1000, scoped, tag = 'scratch operand']
  #allocation3 [shape = 'f32[8,16]{1,0:T(8,128)}', space=vmem, size = 0x1000, scoped, tag = 'scratch operand']
  %s0 = inlined_call_operand.hbm [shape: f32[8,16], index: 0, kind: input, shape index: {}]
  %s1 = inlined_call_operand.hbm [shape: f32[8,16], index: 1, kind: input, shape index: {}]
  %s2 = inlined_call_operand.vmem [shape: f32[8,1], index: 2, kind: output, shape index: {}]
  %s3 = sld [smem:[#allocation0]]
  $region26: #{tpu_custom_call.1} parent=0
    _
  %s5 = ssub.s32 1, %s3
  %s6 = scalar_select 0, %s5, %s3
  $region1: #{tpu_custom_call.1} parent=0
    #allocation4 [shape = 'u8[4096]{0}', space=vmem, size = 0x1000, scoped, tag = 'input window, operand 0, single buffered']
    #allocation5 [shape = 's32[1]{0}', space=sflag, size = 0x4, scoped, tag = 'scoped memory for tpu_custom_call.1']
    #allocation6 [shape = 'u8[4096]{0}', space=vmem, size = 0x1000, scoped, tag = 'input window, operand 1, single buffered']
    #allocation7 [shape = 's32[1]{0}', space=sflag, size = 0x4, scoped, tag = 'scoped memory for tpu_custom_call.1']
    %7 = vsyncpa [#allocation5], 0
    %8 = vsyncpa [#allocation7], 0
    // Predicated region
    $region2: #{tpu_custom_call.1} parent=1 // pred_check
      _
    $region3: #{tpu_custom_call.1} parent=1 // pred_check_branch
      %10 = sbr.rel (0) target = $region5
    $region4: #{tpu_custom_call.1} parent=1 // pred_region
      %s12 = ssub.s32 128, 128
      %13 = vsyncadd [#allocation5], %s12
      %s15 = sshll.u32 [#allocation4], 4
      %s16 = int_to_ptr.vmem [resolvable:$true] %s15
      %18 = dma.hbm_to_vmem [thread:$0]  %s0, 128, %s16, [#allocation5]
    $region5: #{tpu_custom_call.1} parent=1 // pred_fallthru
      _
    // Predicated region
    $region6: #{tpu_custom_call.1} parent=1 // pred_check
      _
    $region7: #{tpu_custom_call.1} parent=1 // pred_check_branch
      %20 = sbr.rel (0) target = $region9
    $region8: #{tpu_custom_call.1} parent=1 // pred_region
      %s22 = ssub.s32 128, 128
      %23 = vsyncadd [#allocation7], %s22
      %s25 = sshll.u32 [#allocation6], 4
      %s26 = int_to_ptr.vmem [resolvable:$true] %s25
      %28 = dma.hbm_to_vmem [thread:$0]  %s1, 128, %s26, [#allocation7]
    $region9: #{tpu_custom_call.1} parent=1 // pred_fallthru
      _
    // Predicated region
    $region10: #{tpu_custom_call.1} parent=1 // pred_check
      _
    $region11: #{tpu_custom_call.1} parent=1 // pred_check_branch
      %30 = sbr.rel (0) target = $region13
    $region12: #{tpu_custom_call.1} parent=1 // pred_region
      %31 = dma.done [#allocation5], 128
    $region13: #{tpu_custom_call.1} parent=1 // pred_fallthru
      _
    // Predicated region
    $region14: #{tpu_custom_call.1} parent=1 // pred_check
      _
    $region15: #{tpu_custom_call.1} parent=1 // pred_check_branch
      %33 = sbr.rel (0) target = $region17
    $region16: #{tpu_custom_call.1} parent=1 // pred_region
      %34 = dma.done [#allocation7], 128
    $region17: #{tpu_custom_call.1} parent=1 // pred_fallthru
      _
    %v35 = vld [vmem:[#allocation4] sm:$0xff]
    %vm36 = vcmask 130048
    %v37 = vsel %vm36, %v35, -inf
    %38 = vmax.xlane.f32.xlu0 %v37
    %v39 = vpop.xlane.xlu0 %38
    %v40 = vsub.f32 %v35, %v39
    %v41 = vmul.f32 %v40, 1.442695
    %v42 = vpow.pop %v41
    %43 = vst.msk [vmem:[#allocation2] sm:$0xff] %vm36, %v42
    %v44 = vld [vmem:[#allocation6] sm:$0x1]
    %v45 = vld [vmem:[#allocation2] sm:$0x1]
    %46 = vxpose.xlu0.b32.start [1/16] %v44, 128
    %47 = vxpose.xlu0.b32.cont [2/16] 0.0, 128
    %48 = vxpose.xlu0.b32.cont [3/16] 0.0, 128
    %49 = vxpose.xlu0.b32.cont [4/16] 0.0, 128
    %50 = vxpose.xlu0.b32.cont [5/16] 0.0, 128
    %51 = vxpose.xlu0.b32.cont [6/16] 0.0, 128
    %52 = vxpose.xlu0.b32.cont [7/16] 0.0, 128
    %53 = vxpose.xlu0.b32.cont [8/16] 0.0, 128
    %54 = vxpose.xlu0.b32.cont [9/16] 0.0, 128
    %55 = vxpose.xlu0.b32.cont [10/16] 0.0, 128
    %56 = vxpose.xlu0.b32.cont [11/16] 0.0, 128
    %57 = vxpose.xlu0.b32.cont [12/16] 0.0, 128
    %58 = vxpose.xlu0.b32.cont [13/16] 0.0, 128
    %59 = vxpose.xlu0.b32.cont [14/16] 0.0, 128
    %60 = vxpose.xlu0.b32.cont [15/16] 0.0, 128
    %61 = vxpose.xlu0.b32.end [16/16] 0.0, 128
    %v62 = vpop.trf.xlu0
    %v63 = vpop.trf.xlu0
    %v64 = vpop.trf.xlu0
    %v65 = vpop.trf.xlu0
    %v66 = vpop.trf.xlu0
    %v67 = vpop.trf.xlu0
    %v68 = vpop.trf.xlu0
    %v69 = vpop.trf.xlu0
    %v70 = vpop.trf.xlu0
    %v71 = vpop.trf.xlu0
    %v72 = vpop.trf.xlu0
    %v73 = vpop.trf.xlu0
    %v74 = vpop.trf.xlu0
    %v75 = vpop.trf.xlu0
    %v76 = vpop.trf.xlu0
    %v77 = vpop.trf.xlu0
    %79 = vset.pattern.permute.xlu0 0
    %80 = vperm.xlu0 %79, %v62
    %v81 = vpop.permute.xlu0 %80
    %84 = vset.pattern.permute.xlu0 0
    %85 = vperm.xlu0 %84, %v63
    %v86 = vpop.permute.xlu0 %85
    %v88 = vlaneseq
    %v89 = vshrl.u32 %v88, 7
    %v90 = vsub.s32 0, %v89
    %v91 = vrot.slane %v44, %v90
    %vm92 = vcmp.ge.f32.partialorder %v81, %v91
    %vm93 = vcmp.ge.f32.partialorder %v86, %v91
    %94 = vxpose.xlu0.b32.start [1/16] %v45, 128
    %95 = vxpose.xlu0.b32.cont [2/16] 0.0, 128
    %96 = vxpose.xlu0.b32.cont [3/16] 0.0, 128
    %97 = vxpose.xlu0.b32.cont [4/16] 0.0, 128
    %98 = vxpose.xlu0.b32.cont [5/16] 0.0, 128
    %99 = vxpose.xlu0.b32.cont [6/16] 0.0, 128
    %100 = vxpose.xlu0.b32.cont [7/16] 0.0, 128
    %101 = vxpose.xlu0.b32.cont [8/16] 0.0, 128
    %102 = vxpose.xlu0.b32.cont [9/16] 0.0, 128
    %103 = vxpose.xlu0.b32.cont [10/16] 0.0, 128
    %104 = vxpose.xlu0.b32.cont [11/16] 0.0, 128
    %105 = vxpose.xlu0.b32.cont [12/16] 0.0, 128
    %106 = vxpose.xlu0.b32.cont [13/16] 0.0, 128
    %107 = vxpose.xlu0.b32.cont [14/16] 0.0, 128
    %108 = vxpose.xlu0.b32.cont [15/16] 0.0, 128
    %109 = vxpose.xlu0.b32.end [16/16] 0.0, 128
    %v110 = vpop.trf.xlu0
    %v111 = vpop.trf.xlu0
    %v112 = vpop.trf.xlu0
    %v113 = vpop.trf.xlu0
    %v114 = vpop.trf.xlu0
    %v115 = vpop.trf.xlu0
    %v116 = vpop.trf.xlu0
    %v117 = vpop.trf.xlu0
    %v118 = vpop.trf.xlu0
    %v119 = vpop.trf.xlu0
    %v120 = vpop.trf.xlu0
    %v121 = vpop.trf.xlu0
    %v122 = vpop.trf.xlu0
    %v123 = vpop.trf.xlu0
    %v124 = vpop.trf.xlu0
    %v125 = vpop.trf.xlu0
    %127 = vset.pattern.permute.xlu0 0
    %128 = vperm.xlu0 %127, %v110
    %v129 = vpop.permute.xlu0 %128
    %132 = vset.pattern.permute.xlu0 0
    %133 = vperm.xlu0 %132, %v111
    %v134 = vpop.permute.xlu0 %133
    %v136 = vsel %vm92, %v129, 0.0
    %v137 = vsel %vm93, %v134, 0.0
    %v138 = vsel %vm36, %v136, 0.0
    %v139 = vsel %vm36, %v137, 0.0
    %v140 = vadd.f32 %v138, %v139
    %v141 = vrot.slane %v140, 4
    %v142 = vadd.f32 %v140, %v141
    %v143 = vrot.slane %v142, 2
    %v144 = vadd.f32 %v142, %v143
    %v145 = vrot.slane %v144, 1
    %v146 = vadd.f32 %v144, %v145
    %vm147 = vcmask 122880
    %148 = vst.msk [vmem:[#allocation3] sm:$0x1] %vm147, %v146
    %v149 = vld [vmem:[#allocation6 + $0x1] sm:$0x1]
    %v150 = vld [vmem:[#allocation2 + $0x1] sm:$0x1]
    %151 = vxpose.xlu0.b32.start [1/16] %v149, 128
    %152 = vxpose.xlu0.b32.cont [2/16] 0.0, 128
    %153 = vxpose.xlu0.b32.cont [3/16] 0.0, 128
    %154 = vxpose.xlu0.b32.cont [4/16] 0.0, 128
    %155 = vxpose.xlu0.b32.cont [5/16] 0.0, 128
    %156 = vxpose.xlu0.b32.cont [6/16] 0.0, 128
    %157 = vxpose.xlu0.b32.cont [7/16] 0.0, 128
    %158 = vxpose.xlu0.b32.cont [8/16] 0.0, 128
    %159 = vxpose.xlu0.b32.cont [9/16] 0.0, 128
    %160 = vxpose.xlu0.b32.cont [10/16] 0.0, 128
    %161 = vxpose.xlu0.b32.cont [11/16] 0.0, 128
    %162 = vxpose.xlu0.b32.cont [12/16] 0.0, 128
    %163 = vxpose.xlu0.b32.cont [13/16] 0.0, 128
    %164 = vxpose.xlu0.b32.cont [14/16] 0.0, 128
    %165 = vxpose.xlu0.b32.cont [15/16] 0.0, 128
    %166 = vxpose.xlu0.b32.end [16/16] 0.0, 128
    %v167 = vpop.trf.xlu0
    %v168 = vpop.trf.xlu0
    %v169 = vpop.trf.xlu0
    %v170 = vpop.trf.xlu0
    %v171 = vpop.trf.xlu0
    %v172 = vpop.trf.xlu0
    %v173 = vpop.trf.xlu0
    %v174 = vpop.trf.xlu0
    %v175 = vpop.trf.xlu0
    %v176 = vpop.trf.xlu0
    %v177 = vpop.trf.xlu0
    %v178 = vpop.trf.xlu0
    %v179 = vpop.trf.xlu0
    %v180 = vpop.trf.xlu0
    %v181 = vpop.trf.xlu0
    %v182 = vpop.trf.xlu0
    %184 = vset.pattern.permute.xlu0 0
    %185 = vperm.xlu0 %184, %v167
    %v186 = vpop.permute.xlu0 %185
    %189 = vset.pattern.permute.xlu0 0
    %190 = vperm.xlu0 %189, %v168
    %v191 = vpop.permute.xlu0 %190
    %v193 = vlaneseq
    %v194 = vshrl.u32 %v193, 7
    %v195 = vsub.s32 0, %v194
    %v196 = vrot.slane %v149, %v195
    %vm197 = vcmp.ge.f32.partialorder %v186, %v196
    %vm198 = vcmp.ge.f32.partialorder %v191, %v196
    %199 = vxpose.xlu0.b32.start [1/16] %v150, 128
    %200 = vxpose.xlu0.b32.cont [2/16] 0.0, 128
    %201 = vxpose.xlu0.b32.cont [3/16] 0.0, 128
    %202 = vxpose.xlu0.b32.cont [4/16] 0.0, 128
    %203 = vxpose.xlu0.b32.cont [5/16] 0.0, 128
    %204 = vxpose.xlu0.b32.cont [6/16] 0.0, 128
    %205 = vxpose.xlu0.b32.cont [7/16] 0.0, 128
    %206 = vxpose.xlu0.b32.cont [8/16] 0.0, 128
    %207 = vxpose.xlu0.b32.cont [9/16] 0.0, 128
    %208 = vxpose.xlu0.b32.cont [10/16] 0.0, 128
    %209 = vxpose.xlu0.b32.cont [11/16] 0.0, 128
    %210 = vxpose.xlu0.b32.cont [12/16] 0.0, 128
    %211 = vxpose.xlu0.b32.cont [13/16] 0.0, 128
    %212 = vxpose.xlu0.b32.cont [14/16] 0.0, 128
    %213 = vxpose.xlu0.b32.cont [15/16] 0.0, 128
    %214 = vxpose.xlu0.b32.end [16/16] 0.0, 128
    %v215 = vpop.trf.xlu0
    %v216 = vpop.trf.xlu0
    %v217 = vpop.trf.xlu0
    %v218 = vpop.trf.xlu0
    %v219 = vpop.trf.xlu0
    %v220 = vpop.trf.xlu0
    %v221 = vpop.trf.xlu0
    %v222 = vpop.trf.xlu0
    %v223 = vpop.trf.xlu0
    %v224 = vpop.trf.xlu0
    %v225 = vpop.trf.xlu0
    %v226 = vpop.trf.xlu0
    %v227 = vpop.trf.xlu0
    %v228 = vpop.trf.xlu0
    %v229 = vpop.trf.xlu0
    %v230 = vpop.trf.xlu0
    %232 = vset.pattern.permute.xlu0 0
    %233 = vperm.xlu0 %232, %v215
    %v234 = vpop.permute.xlu0 %233
    %237 = vset.pattern.permute.xlu0 0
    %238 = vperm.xlu0 %237, %v216
    %v239 = vpop.permute.xlu0 %238
    %v241 = vsel %vm197, %v234, 0.0
    %v242 = vsel %vm198, %v239, 0.0
    %v243 = vsel %vm36, %v241, 0.0
    %v244 = vsel %vm36, %v242, 0.0
    %v245 = vadd.f32 %v243, %v244
    %v246 = vrot.slane %v245, 4
    %v247 = vadd.f32 %v245, %v246
    %v248 = vrot.slane %v247, 2
    %v249 = vadd.f32 %v247, %v248
    %v250 = vrot.slane %v249, 1
    %v251 = vadd.f32 %v249, %v250
    %252 = vst.msk [vmem:[#allocation3 + $0x1] sm:$0x1] %vm147, %v251
    %v253 = vld [vmem:[#allocation6 + $0x2] sm:$0x1]
    %v254 = vld [vmem:[#allocation2 + $0x2] sm:$0x1]
    %255 = vxpose.xlu0.b32.start [1/16] %v253, 128
    %256 = vxpose.xlu0.b32.cont [2/16] 0.0, 128
    %257 = vxpose.xlu0.b32.cont [3/16] 0.0, 128
    %258 = vxpose.xlu0.b32.cont [4/16] 0.0, 128
    %259 = vxpose.xlu0.b32.cont [5/16] 0.0, 128
    %260 = vxpose.xlu0.b32.cont [6/16] 0.0, 128
    %261 = vxpose.xlu0.b32.cont [7/16] 0.0, 128
    %262 = vxpose.xlu0.b32.cont [8/16] 0.0, 128
    %263 = vxpose.xlu0.b32.cont [9/16] 0.0, 128
    %264 = vxpose.xlu0.b32.cont [10/16] 0.0, 128
    %265 = vxpose.xlu0.b32.cont [11/16] 0.0, 128
    %266 = vxpose.xlu0.b32.cont [12/16] 0.0, 128
    %267 = vxpose.xlu0.b32.cont [13/16] 0.0, 128
    %268 = vxpose.xlu0.b32.cont [14/16] 0.0, 128
    %269 = vxpose.xlu0.b32.cont [15/16] 0.0, 128
    %270 = vxpose.xlu0.b32.end [16/16] 0.0, 128
    %v271 = vpop.trf.xlu0
    %v272 = vpop.trf.xlu0
    %v273 = vpop.trf.xlu0
    %v274 = vpop.trf.xlu0
    %v275 = vpop.trf.xlu0
    %v276 = vpop.trf.xlu0
    %v277 = vpop.trf.xlu0
    %v278 = vpop.trf.xlu0
    %v279 = vpop.trf.xlu0
    %v280 = vpop.trf.xlu0
    %v281 = vpop.trf.xlu0
    %v282 = vpop.trf.xlu0
    %v283 = vpop.trf.xlu0
    %v284 = vpop.trf.xlu0
    %v285 = vpop.trf.xlu0
    %v286 = vpop.trf.xlu0
    %288 = vset.pattern.permute.xlu0 0
    %289 = vperm.xlu0 %288, %v271
    %v290 = vpop.permute.xlu0 %289
    %293 = vset.pattern.permute.xlu0 0
    %294 = vperm.xlu0 %293, %v272
    %v295 = vpop.permute.xlu0 %294
    %v297 = vlaneseq
    %v298 = vshrl.u32 %v297, 7
    %v299 = vsub.s32 0, %v298
    %v300 = vrot.slane %v253, %v299
    %vm301 = vcmp.ge.f32.partialorder %v290, %v300
    %vm302 = vcmp.ge.f32.partialorder %v295, %v300
    %303 = vxpose.xlu0.b32.start [1/16] %v254, 128
    %304 = vxpose.xlu0.b32.cont [2/16] 0.0, 128
    %305 = vxpose.xlu0.b32.cont [3/16] 0.0, 128
    %306 = vxpose.xlu0.b32.cont [4/16] 0.0, 128
    %307 = vxpose.xlu0.b32.cont [5/16] 0.0, 128
    %308 = vxpose.xlu0.b32.cont [6/16] 0.0, 128
    %309 = vxpose.xlu0.b32.cont [7/16] 0.0, 128
    %310 = vxpose.xlu0.b32.cont [8/16] 0.0, 128
    %311 = vxpose.xlu0.b32.cont [9/16] 0.0, 128
    %312 = vxpose.xlu0.b32.cont [10/16] 0.0, 128
    %313 = vxpose.xlu0.b32.cont [11/16] 0.0, 128
    %314 = vxpose.xlu0.b32.cont [12/16] 0.0, 128
    %315 = vxpose.xlu0.b32.cont [13/16] 0.0, 128
    %316 = vxpose.xlu0.b32.cont [14/16] 0.0, 128
    %317 = vxpose.xlu0.b32.cont [15/16] 0.0, 128
    %318 = vxpose.xlu0.b32.end [16/16] 0.0, 128
    %v319 = vpop.trf.xlu0
    %v320 = vpop.trf.xlu0
    %v321 = vpop.trf.xlu0
    %v322 = vpop.trf.xlu0
    %v323 = vpop.trf.xlu0
    %v324 = vpop.trf.xlu0
    %v325 = vpop.trf.xlu0
    %v326 = vpop.trf.xlu0
    %v327 = vpop.trf.xlu0
    %v328 = vpop.trf.xlu0
    %v329 = vpop.trf.xlu0
    %v330 = vpop.trf.xlu0
    %v331 = vpop.trf.xlu0
    %v332 = vpop.trf.xlu0
    %v333 = vpop.trf.xlu0
    %v334 = vpop.trf.xlu0
    %336 = vset.pattern.permute.xlu0 0
    %337 = vperm.xlu0 %336, %v319
    %v338 = vpop.permute.xlu0 %337
    %341 = vset.pattern.permute.xlu0 0
    %342 = vperm.xlu0 %341, %v320
    %v343 = vpop.permute.xlu0 %342
    %v345 = vsel %vm301, %v338, 0.0
    %v346 = vsel %vm302, %v343, 0.0
    %v347 = vsel %vm36, %v345, 0.0
    %v348 = vsel %vm36, %v346, 0.0
    %v349 = vadd.f32 %v347, %v348
    %v350 = vrot.slane %v349, 4
    %v351 = vadd.f32 %v349, %v350
    %v352 = vrot.slane %v351, 2
    %v353 = vadd.f32 %v351, %v352
    %v354 = vrot.slane %v353, 1
    %v355 = vadd.f32 %v353, %v354
    %356 = vst.msk [vmem:[#allocation3 + $0x2] sm:$0x1] %vm147, %v355
    %v357 = vld [vmem:[#allocation6 + $0x3] sm:$0x1]
    %v358 = vld [vmem:[#allocation2 + $0x3] sm:$0x1]
    %359 = vxpose.xlu0.b32.start [1/16] %v357, 128
    %360 = vxpose.xlu0.b32.cont [2/16] 0.0, 128
    %361 = vxpose.xlu0.b32.cont [3/16] 0.0, 128
    %362 = vxpose.xlu0.b32.cont [4/16] 0.0, 128
    %363 = vxpose.xlu0.b32.cont [5/16] 0.0, 128
    %364 = vxpose.xlu0.b32.cont [6/16] 0.0, 128
    %365 = vxpose.xlu0.b32.cont [7/16] 0.0, 128
    %366 = vxpose.xlu0.b32.cont [8/16] 0.0, 128
    %367 = vxpose.xlu0.b32.cont [9/16] 0.0, 128
    %368 = vxpose.xlu0.b32.cont [10/16] 0.0, 128
    %369 = vxpose.xlu0.b32.cont [11/16] 0.0, 128
    %370 = vxpose.xlu0.b32.cont [12/16] 0.0, 128
    %371 = vxpose.xlu0.b32.cont [13/16] 0.0, 128
    %372 = vxpose.xlu0.b32.cont [14/16] 0.0, 128
    %373 = vxpose.xlu0.b32.cont [15/16] 0.0, 128
    %374 = vxpose.xlu0.b32.end [16/16] 0.0, 128
    %v375 = vpop.trf.xlu0
    %v376 = vpop.trf.xlu0
    %v377 = vpop.trf.xlu0
    %v378 = vpop.trf.xlu0
    %v379 = vpop.trf.xlu0
    %v380 = vpop.trf.xlu0
    %v381 = vpop.trf.xlu0
    %v382 = vpop.trf.xlu0
    %v383 = vpop.trf.xlu0
    %v384 = vpop.trf.xlu0
    %v385 = vpop.trf.xlu0
    %v386 = vpop.trf.xlu0
    %v387 = vpop.trf.xlu0
    %v388 = vpop.trf.xlu0
    %v389 = vpop.trf.xlu0
    %v390 = vpop.trf.xlu0
    %392 = vset.pattern.permute.xlu0 0
    %393 = vperm.xlu0 %392, %v375
    %v394 = vpop.permute.xlu0 %393
    %397 = vset.pattern.permute.xlu0 0
    %398 = vperm.xlu0 %397, %v376
    %v399 = vpop.permute.xlu0 %398
    %v401 = vlaneseq
    %v402 = vshrl.u32 %v401, 7
    %v403 = vsub.s32 0, %v402
    %v404 = vrot.slane %v357, %v403
    %vm405 = vcmp.ge.f32.partialorder %v394, %v404
    %vm406 = vcmp.ge.f32.partialorder %v399, %v404
    %407 = vxpose.xlu0.b32.start [1/16] %v358, 128
    %408 = vxpose.xlu0.b32.cont [2/16] 0.0, 128
    %409 = vxpose.xlu0.b32.cont [3/16] 0.0, 128
    %410 = vxpose.xlu0.b32.cont [4/16] 0.0, 128
    %411 = vxpose.xlu0.b32.cont [5/16] 0.0, 128
    %412 = vxpose.xlu0.b32.cont [6/16] 0.0, 128
    %413 = vxpose.xlu0.b32.cont [7/16] 0.0, 128
    %414 = vxpose.xlu0.b32.cont [8/16] 0.0, 128
    %415 = vxpose.xlu0.b32.cont [9/16] 0.0, 128
    %416 = vxpose.xlu0.b32.cont [10/16] 0.0, 128
    %417 = vxpose.xlu0.b32.cont [11/16] 0.0, 128
    %418 = vxpose.xlu0.b32.cont [12/16] 0.0, 128
    %419 = vxpose.xlu0.b32.cont [13/16] 0.0, 128
    %420 = vxpose.xlu0.b32.cont [14/16] 0.0, 128
    %421 = vxpose.xlu0.b32.cont [15/16] 0.0, 128
    %422 = vxpose.xlu0.b32.end [16/16] 0.0, 128
    %v423 = vpop.trf.xlu0
    %v424 = vpop.trf.xlu0
    %v425 = vpop.trf.xlu0
    %v426 = vpop.trf.xlu0
    %v427 = vpop.trf.xlu0
    %v428 = vpop.trf.xlu0
    %v429 = vpop.trf.xlu0
    %v430 = vpop.trf.xlu0
    %v431 = vpop.trf.xlu0
    %v432 = vpop.trf.xlu0
    %v433 = vpop.trf.xlu0
    %v434 = vpop.trf.xlu0
    %v435 = vpop.trf.xlu0
    %v436 = vpop.trf.xlu0
    %v437 = vpop.trf.xlu0
    %v438 = vpop.trf.xlu0
    %440 = vset.pattern.permute.xlu0 0
    %441 = vperm.xlu0 %440, %v423
    %v442 = vpop.permute.xlu0 %441
    %445 = vset.pattern.permute.xlu0 0
    %446 = vperm.xlu0 %445, %v424
    %v447 = vpop.permute.xlu0 %446
    %v449 = vsel %vm405, %v442, 0.0
    %v450 = vsel %vm406, %v447, 0.0
    %v451 = vsel %vm36, %v449, 0.0
    %v452 = vsel %vm36, %v450, 0.0
    %v453 = vadd.f32 %v451, %v452
    %v454 = vrot.slane %v453, 4
    %v455 = vadd.f32 %v453, %v454
    %v456 = vrot.slane %v455, 2
    %v457 = vadd.f32 %v455, %v456
    %v458 = vrot.slane %v457, 1
    %v459 = vadd.f32 %v457, %v458
    %460 = vst.msk [vmem:[#allocation3 + $0x3] sm:$0x1] %vm147, %v459
    %v461 = vld [vmem:[#allocation6 + $0x4] sm:$0x1]
    %v462 = vld [vmem:[#allocation2 + $0x4] sm:$0x1]
    %463 = vxpose.xlu0.b32.start [1/16] %v461, 128
    %464 = vxpose.xlu0.b32.cont [2/16] 0.0, 128
    %465 = vxpose.xlu0.b32.cont [3/16] 0.0, 128
    %466 = vxpose.xlu0.b32.cont [4/16] 0.0, 128
    %467 = vxpose.xlu0.b32.cont [5/16] 0.0, 128
    %468 = vxpose.xlu0.b32.cont [6/16] 0.0, 128
    %469 = vxpose.xlu0.b32.cont [7/16] 0.0, 128
    %470 = vxpose.xlu0.b32.cont [8/16] 0.0, 128
    %471 = vxpose.xlu0.b32.cont [9/16] 0.0, 128
    %472 = vxpose.xlu0.b32.cont [10/16] 0.0, 128
    %473 = vxpose.xlu0.b32.cont [11/16] 0.0, 128
    %474 = vxpose.xlu0.b32.cont [12/16] 0.0, 128
    %475 = vxpose.xlu0.b32.cont [13/16] 0.0, 128
    %476 = vxpose.xlu0.b32.cont [14/16] 0.0, 128
    %477 = vxpose.xlu0.b32.cont [15/16] 0.0, 128
    %478 = vxpose.xlu0.b32.end [16/16] 0.0, 128
    %v479 = vpop.trf.xlu0
    %v480 = vpop.trf.xlu0
    %v481 = vpop.trf.xlu0
    %v482 = vpop.trf.xlu0
    %v483 = vpop.trf.xlu0
    %v484 = vpop.trf.xlu0
    %v485 = vpop.trf.xlu0
    %v486 = vpop.trf.xlu0
    %v487 = vpop.trf.xlu0
    %v488 = vpop.trf.xlu0
    %v489 = vpop.trf.xlu0
    %v490 = vpop.trf.xlu0
    %v491 = vpop.trf.xlu0
    %v492 = vpop.trf.xlu0
    %v493 = vpop.trf.xlu0
    %v494 = vpop.trf.xlu0
    %496 = vset.pattern.permute.xlu0 0
    %497 = vperm.xlu0 %496, %v479
    %v498 = vpop.permute.xlu0 %497
    %501 = vset.pattern.permute.xlu0 0
    %502 = vperm.xlu0 %501, %v480
    %v503 = vpop.permute.xlu0 %502
    %v505 = vlaneseq
    %v506 = vshrl.u32 %v505, 7
    %v507 = vsub.s32 0, %v506
    %v508 = vrot.slane %v461, %v507
    %vm509 = vcmp.ge.f32.partialorder %v498, %v508
    %vm510 = vcmp.ge.f32.partialorder %v503, %v508
    %511 = vxpose.xlu0.b32.start [1/16] %v462, 128
    %512 = vxpose.xlu0.b32.cont [2/16] 0.0, 128
    %513 = vxpose.xlu0.b32.cont [3/16] 0.0, 128
    %514 = vxpose.xlu0.b32.cont [4/16] 0.0, 128
    %515 = vxpose.xlu0.b32.cont [5/16] 0.0, 128
    %516 = vxpose.xlu0.b32.cont [6/16] 0.0, 128
    %517 = vxpose.xlu0.b32.cont [7/16] 0.0, 128
    %518 = vxpose.xlu0.b32.cont [8/16] 0.0, 128
    %519 = vxpose.xlu0.b32.cont [9/16] 0.0, 128
    %520 = vxpose.xlu0.b32.cont [10/16] 0.0, 128
    %521 = vxpose.xlu0.b32.cont [11/16] 0.0, 128
    %522 = vxpose.xlu0.b32.cont [12/16] 0.0, 128
    %523 = vxpose.xlu0.b32.cont [13/16] 0.0, 128
    %524 = vxpose.xlu0.b32.cont [14/16] 0.0, 128
    %525 = vxpose.xlu0.b32.cont [15/16] 0.0, 128
    %526 = vxpose.xlu0.b32.end [16/16] 0.0, 128
    %v527 = vpop.trf.xlu0
    %v528 = vpop.trf.xlu0
    %v529 = vpop.trf.xlu0
    %v530 = vpop.trf.xlu0
    %v531 = vpop.trf.xlu0
    %v532 = vpop.trf.xlu0
    %v533 = vpop.trf.xlu0
    %v534 = vpop.trf.xlu0
    %v535 = vpop.trf.xlu0
    %v536 = vpop.trf.xlu0
    %v537 = vpop.trf.xlu0
    %v538 = vpop.trf.xlu0
    %v539 = vpop.trf.xlu0
    %v540 = vpop.trf.xlu0
    %v541 = vpop.trf.xlu0
    %v542 = vpop.trf.xlu0
    %544 = vset.pattern.permute.xlu0 0
    %545 = vperm.xlu0 %544, %v527
    %v546 = vpop.permute.xlu0 %545
    %549 = vset.pattern.permute.xlu0 0
    %550 = vperm.xlu0 %549, %v528
    %v551 = vpop.permute.xlu0 %550
    %v553 = vsel %vm509, %v546, 0.0
    %v554 = vsel %vm510, %v551, 0.0
    %v555 = vsel %vm36, %v553, 0.0
    %v556 = vsel %vm36, %v554, 0.0
    %v557 = vadd.f32 %v555, %v556
    %v558 = vrot.slane %v557, 4
    %v559 = vadd.f32 %v557, %v558
    %v560 = vrot.slane %v559, 2
    %v561 = vadd.f32 %v559, %v560
    %v562 = vrot.slane %v561, 1
    %v563 = vadd.f32 %v561, %v562
    %564 = vst.msk [vmem:[#allocation3 + $0x4] sm:$0x1] %vm147, %v563
    %v565 = vld [vmem:[#allocation6 + $0x5] sm:$0x1]
    %v566 = vld [vmem:[#allocation2 + $0x5] sm:$0x1]
    %567 = vxpose.xlu0.b32.start [1/16] %v565, 128
    %568 = vxpose.xlu0.b32.cont [2/16] 0.0, 128
    %569 = vxpose.xlu0.b32.cont [3/16] 0.0, 128
    %570 = vxpose.xlu0.b32.cont [4/16] 0.0, 128
    %571 = vxpose.xlu0.b32.cont [5/16] 0.0, 128
    %572 = vxpose.xlu0.b32.cont [6/16] 0.0, 128
    %573 = vxpose.xlu0.b32.cont [7/16] 0.0, 128
    %574 = vxpose.xlu0.b32.cont [8/16] 0.0, 128
    %575 = vxpose.xlu0.b32.cont [9/16] 0.0, 128
    %576 = vxpose.xlu0.b32.cont [10/16] 0.0, 128
    %577 = vxpose.xlu0.b32.cont [11/16] 0.0, 128
    %578 = vxpose.xlu0.b32.cont [12/16] 0.0, 128
    %579 = vxpose.xlu0.b32.cont [13/16] 0.0, 128
    %580 = vxpose.xlu0.b32.cont [14/16] 0.0, 128
    %581 = vxpose.xlu0.b32.cont [15/16] 0.0, 128
    %582 = vxpose.xlu0.b32.end [16/16] 0.0, 128
    %v583 = vpop.trf.xlu0
    %v584 = vpop.trf.xlu0
    %v585 = vpop.trf.xlu0
    %v586 = vpop.trf.xlu0
    %v587 = vpop.trf.xlu0
    %v588 = vpop.trf.xlu0
    %v589 = vpop.trf.xlu0
    %v590 = vpop.trf.xlu0
    %v591 = vpop.trf.xlu0
    %v592 = vpop.trf.xlu0
    %v593 = vpop.trf.xlu0
    %v594 = vpop.trf.xlu0
    %v595 = vpop.trf.xlu0
    %v596 = vpop.trf.xlu0
    %v597 = vpop.trf.xlu0
    %v598 = vpop.trf.xlu0
    %600 = vset.pattern.permute.xlu0 0
    %601 = vperm.xlu0 %600, %v583
    %v602 = vpop.permute.xlu0 %601
    %605 = vset.pattern.permute.xlu0 0
    %606 = vperm.xlu0 %605, %v584
    %v607 = vpop.permute.xlu0 %606
    %v609 = vlaneseq
    %v610 = vshrl.u32 %v609, 7
    %v611 = vsub.s32 0, %v610
    %v612 = vrot.slane %v565, %v611
    %vm613 = vcmp.ge.f32.partialorder %v602, %v612
    %vm614 = vcmp.ge.f32.partialorder %v607, %v612
    %615 = vxpose.xlu0.b32.start [1/16] %v566, 128
    %616 = vxpose.xlu0.b32.cont [2/16] 0.0, 128
    %617 = vxpose.xlu0.b32.cont [3/16] 0.0, 128
    %618 = vxpose.xlu0.b32.cont [4/16] 0.0, 128
    %619 = vxpose.xlu0.b32.cont [5/16] 0.0, 128
    %620 = vxpose.xlu0.b32.cont [6/16] 0.0, 128
    %621 = vxpose.xlu0.b32.cont [7/16] 0.0, 128
    %622 = vxpose.xlu0.b32.cont [8/16] 0.0, 128
    %623 = vxpose.xlu0.b32.cont [9/16] 0.0, 128
    %624 = vxpose.xlu0.b32.cont [10/16] 0.0, 128
    %625 = vxpose.xlu0.b32.cont [11/16] 0.0, 128
    %626 = vxpose.xlu0.b32.cont [12/16] 0.0, 128
    %627 = vxpose.xlu0.b32.cont [13/16] 0.0, 128
    %628 = vxpose.xlu0.b32.cont [14/16] 0.0, 128
    %629 = vxpose.xlu0.b32.cont [15/16] 0.0, 128
    %630 = vxpose.xlu0.b32.end [16/16] 0.0, 128
    %v631 = vpop.trf.xlu0
    %v632 = vpop.trf.xlu0
    %v633 = vpop.trf.xlu0
    %v634 = vpop.trf.xlu0
    %v635 = vpop.trf.xlu0
    %v636 = vpop.trf.xlu0
    %v637 = vpop.trf.xlu0
    %v638 = vpop.trf.xlu0
    %v639 = vpop.trf.xlu0
    %v640 = vpop.trf.xlu0
    %v641 = vpop.trf.xlu0
    %v642 = vpop.trf.xlu0
    %v643 = vpop.trf.xlu0
    %v644 = vpop.trf.xlu0
    %v645 = vpop.trf.xlu0
    %v646 = vpop.trf.xlu0
    %648 = vset.pattern.permute.xlu0 0
    %649 = vperm.xlu0 %648, %v631
    %v650 = vpop.permute.xlu0 %649
    %653 = vset.pattern.permute.xlu0 0
    %654 = vperm.xlu0 %653, %v632
    %v655 = vpop.permute.xlu0 %654
    %v657 = vsel %vm613, %v650, 0.0
    %v658 = vsel %vm614, %v655, 0.0
    %v659 = vsel %vm36, %v657, 0.0
    %v660 = vsel %vm36, %v658, 0.0
    %v661 = vadd.f32 %v659, %v660
    %v662 = vrot.slane %v661, 4
    %v663 = vadd.f32 %v661, %v662
    %v664 = vrot.slane %v663, 2
    %v665 = vadd.f32 %v663, %v664
    %v666 = vrot.slane %v665, 1
    %v667 = vadd.f32 %v665, %v666
    %668 = vst.msk [vmem:[#allocation3 + $0x5] sm:$0x1] %vm147, %v667
    %v669 = vld [vmem:[#allocation6 + $0x6] sm:$0x1]
    %v670 = vld [vmem:[#allocation2 + $0x6] sm:$0x1]
    %671 = vxpose.xlu0.b32.start [1/16] %v669, 128
    %672 = vxpose.xlu0.b32.cont [2/16] 0.0, 128
    %673 = vxpose.xlu0.b32.cont [3/16] 0.0, 128
    %674 = vxpose.xlu0.b32.cont [4/16] 0.0, 128
    %675 = vxpose.xlu0.b32.cont [5/16] 0.0, 128
    %676 = vxpose.xlu0.b32.cont [6/16] 0.0, 128
    %677 = vxpose.xlu0.b32.cont [7/16] 0.0, 128
    %678 = vxpose.xlu0.b32.cont [8/16] 0.0, 128
    %679 = vxpose.xlu0.b32.cont [9/16] 0.0, 128
    %680 = vxpose.xlu0.b32.cont [10/16] 0.0, 128
    %681 = vxpose.xlu0.b32.cont [11/16] 0.0, 128
    %682 = vxpose.xlu0.b32.cont [12/16] 0.0, 128
    %683 = vxpose.xlu0.b32.cont [13/16] 0.0, 128
    %684 = vxpose.xlu0.b32.cont [14/16] 0.0, 128
    %685 = vxpose.xlu0.b32.cont [15/16] 0.0, 128
    %686 = vxpose.xlu0.b32.end [16/16] 0.0, 128
    %v687 = vpop.trf.xlu0
    %v688 = vpop.trf.xlu0
    %v689 = vpop.trf.xlu0
    %v690 = vpop.trf.xlu0
    %v691 = vpop.trf.xlu0
    %v692 = vpop.trf.xlu0
    %v693 = vpop.trf.xlu0
    %v694 = vpop.trf.xlu0
    %v695 = vpop.trf.xlu0
    %v696 = vpop.trf.xlu0
    %v697 = vpop.trf.xlu0
    %v698 = vpop.trf.xlu0
    %v699 = vpop.trf.xlu0
    %v700 = vpop.trf.xlu0
    %v701 = vpop.trf.xlu0
    %v702 = vpop.trf.xlu0
    %704 = vset.pattern.permute.xlu0 0
    %705 = vperm.xlu0 %704, %v687
    %v706 = vpop.permute.xlu0 %705
    %709 = vset.pattern.permute.xlu0 0
    %710 = vperm.xlu0 %709, %v688
    %v711 = vpop.permute.xlu0 %710
    %v713 = vlaneseq
    %v714 = vshrl.u32 %v713, 7
    %v715 = vsub.s32 0, %v714
    %v716 = vrot.slane %v669, %v715
    %vm717 = vcmp.ge.f32.partialorder %v706, %v716
    %vm718 = vcmp.ge.f32.partialorder %v711, %v716
    %719 = vxpose.xlu0.b32.start [1/16] %v670, 128
    %720 = vxpose.xlu0.b32.cont [2/16] 0.0, 128
    %721 = vxpose.xlu0.b32.cont [3/16] 0.0, 128
    %722 = vxpose.xlu0.b32.cont [4/16] 0.0, 128
    %723 = vxpose.xlu0.b32.cont [5/16] 0.0, 128
    %724 = vxpose.xlu0.b32.cont [6/16] 0.0, 128
    %725 = vxpose.xlu0.b32.cont [7/16] 0.0, 128
    %726 = vxpose.xlu0.b32.cont [8/16] 0.0, 128
    %727 = vxpose.xlu0.b32.cont [9/16] 0.0, 128
    %728 = vxpose.xlu0.b32.cont [10/16] 0.0, 128
    %729 = vxpose.xlu0.b32.cont [11/16] 0.0, 128
    %730 = vxpose.xlu0.b32.cont [12/16] 0.0, 128
    %731 = vxpose.xlu0.b32.cont [13/16] 0.0, 128
    %732 = vxpose.xlu0.b32.cont [14/16] 0.0, 128
    %733 = vxpose.xlu0.b32.cont [15/16] 0.0, 128
    %734 = vxpose.xlu0.b32.end [16/16] 0.0, 128
    %v735 = vpop.trf.xlu0
    %v736 = vpop.trf.xlu0
    %v737 = vpop.trf.xlu0
    %v738 = vpop.trf.xlu0
    %v739 = vpop.trf.xlu0
    %v740 = vpop.trf.xlu0
    %v741 = vpop.trf.xlu0
    %v742 = vpop.trf.xlu0
    %v743 = vpop.trf.xlu0
    %v744 = vpop.trf.xlu0
    %v745 = vpop.trf.xlu0
    %v746 = vpop.trf.xlu0
    %v747 = vpop.trf.xlu0
    %v748 = vpop.trf.xlu0
    %v749 = vpop.trf.xlu0
    %v750 = vpop.trf.xlu0
    %752 = vset.pattern.permute.xlu0 0
    %753 = vperm.xlu0 %752, %v735
    %v754 = vpop.permute.xlu0 %753
    %757 = vset.pattern.permute.xlu0 0
    %758 = vperm.xlu0 %757, %v736
    %v759 = vpop.permute.xlu0 %758
    %v761 = vsel %vm717, %v754, 0.0
    %v762 = vsel %vm718, %v759, 0.0
    %v763 = vsel %vm36, %v761, 0.0
    %v764 = vsel %vm36, %v762, 0.0
    %v765 = vadd.f32 %v763, %v764
    %v766 = vrot.slane %v765, 4
    %v767 = vadd.f32 %v765, %v766
    %v768 = vrot.slane %v767, 2
    %v769 = vadd.f32 %v767, %v768
    %v770 = vrot.slane %v769, 1
    %v771 = vadd.f32 %v769, %v770
    %772 = vst.msk [vmem:[#allocation3 + $0x6] sm:$0x1] %vm147, %v771
    %v773 = vld [vmem:[#allocation6 + $0x7] sm:$0x1]
    %v774 = vld [vmem:[#allocation2 + $0x7] sm:$0x1]
    %775 = vxpose.xlu0.b32.start [1/16] %v773, 128
    %776 = vxpose.xlu0.b32.cont [2/16] 0.0, 128
    %777 = vxpose.xlu0.b32.cont [3/16] 0.0, 128
    %778 = vxpose.xlu0.b32.cont [4/16] 0.0, 128
    %779 = vxpose.xlu0.b32.cont [5/16] 0.0, 128
    %780 = vxpose.xlu0.b32.cont [6/16] 0.0, 128
    %781 = vxpose.xlu0.b32.cont [7/16] 0.0, 128
    %782 = vxpose.xlu0.b32.cont [8/16] 0.0, 128
    %783 = vxpose.xlu0.b32.cont [9/16] 0.0, 128
    %784 = vxpose.xlu0.b32.cont [10/16] 0.0, 128
    %785 = vxpose.xlu0.b32.cont [11/16] 0.0, 128
    %786 = vxpose.xlu0.b32.cont [12/16] 0.0, 128
    %787 = vxpose.xlu0.b32.cont [13/16] 0.0, 128
    %788 = vxpose.xlu0.b32.cont [14/16] 0.0, 128
    %789 = vxpose.xlu0.b32.cont [15/16] 0.0, 128
    %790 = vxpose.xlu0.b32.end [16/16] 0.0, 128
    %v791 = vpop.trf.xlu0
    %v792 = vpop.trf.xlu0
    %v793 = vpop.trf.xlu0
    %v794 = vpop.trf.xlu0
    %v795 = vpop.trf.xlu0
    %v796 = vpop.trf.xlu0
    %v797 = vpop.trf.xlu0
    %v798 = vpop.trf.xlu0
    %v799 = vpop.trf.xlu0
    %v800 = vpop.trf.xlu0
    %v801 = vpop.trf.xlu0
    %v802 = vpop.trf.xlu0
    %v803 = vpop.trf.xlu0
    %v804 = vpop.trf.xlu0
    %v805 = vpop.trf.xlu0
    %v806 = vpop.trf.xlu0
    %808 = vset.pattern.permute.xlu0 0
    %809 = vperm.xlu0 %808, %v791
    %v810 = vpop.permute.xlu0 %809
    %813 = vset.pattern.permute.xlu0 0
    %814 = vperm.xlu0 %813, %v792
    %v815 = vpop.permute.xlu0 %814
    %v817 = vlaneseq
    %v818 = vshrl.u32 %v817, 7
    %v819 = vsub.s32 0, %v818
    %v820 = vrot.slane %v773, %v819
    %vm821 = vcmp.ge.f32.partialorder %v810, %v820
    %vm822 = vcmp.ge.f32.partialorder %v815, %v820
    %823 = vxpose.xlu0.b32.start [1/16] %v774, 128
    %824 = vxpose.xlu0.b32.cont [2/16] 0.0, 128
    %825 = vxpose.xlu0.b32.cont [3/16] 0.0, 128
    %826 = vxpose.xlu0.b32.cont [4/16] 0.0, 128
    %827 = vxpose.xlu0.b32.cont [5/16] 0.0, 128
    %828 = vxpose.xlu0.b32.cont [6/16] 0.0, 128
    %829 = vxpose.xlu0.b32.cont [7/16] 0.0, 128
    %830 = vxpose.xlu0.b32.cont [8/16] 0.0, 128
    %831 = vxpose.xlu0.b32.cont [9/16] 0.0, 128
    %832 = vxpose.xlu0.b32.cont [10/16] 0.0, 128
    %833 = vxpose.xlu0.b32.cont [11/16] 0.0, 128
    %834 = vxpose.xlu0.b32.cont [12/16] 0.0, 128
    %835 = vxpose.xlu0.b32.cont [13/16] 0.0, 128
    %836 = vxpose.xlu0.b32.cont [14/16] 0.0, 128
    %837 = vxpose.xlu0.b32.cont [15/16] 0.0, 128
    %838 = vxpose.xlu0.b32.end [16/16] 0.0, 128
    %v839 = vpop.trf.xlu0
    %v840 = vpop.trf.xlu0
    %v841 = vpop.trf.xlu0
    %v842 = vpop.trf.xlu0
    %v843 = vpop.trf.xlu0
    %v844 = vpop.trf.xlu0
    %v845 = vpop.trf.xlu0
    %v846 = vpop.trf.xlu0
    %v847 = vpop.trf.xlu0
    %v848 = vpop.trf.xlu0
    %v849 = vpop.trf.xlu0
    %v850 = vpop.trf.xlu0
    %v851 = vpop.trf.xlu0
    %v852 = vpop.trf.xlu0
    %v853 = vpop.trf.xlu0
    %v854 = vpop.trf.xlu0
    %856 = vset.pattern.permute.xlu0 0
    %857 = vperm.xlu0 %856, %v839
    %v858 = vpop.permute.xlu0 %857
    %861 = vset.pattern.permute.xlu0 0
    %862 = vperm.xlu0 %861, %v840
    %v863 = vpop.permute.xlu0 %862
    %v865 = vsel %vm821, %v858, 0.0
    %v866 = vsel %vm822, %v863, 0.0
    %v867 = vsel %vm36, %v865, 0.0
    %v868 = vsel %vm36, %v866, 0.0
    %v869 = vadd.f32 %v867, %v868
    %v870 = vrot.slane %v869, 4
    %v871 = vadd.f32 %v869, %v870
    %v872 = vrot.slane %v871, 2
    %v873 = vadd.f32 %v871, %v872
    %v874 = vrot.slane %v873, 1
    %v875 = vadd.f32 %v873, %v874
    %876 = vst.msk [vmem:[#allocation3 + $0x7] sm:$0x1] %vm147, %v875
    %v877 = vld [vmem:[#allocation3] sm:$0xff]
    %v878 = vadd.f32 %v877, 1e-10
    %v879 = vlog2.pop %v878
    %v880 = vmul.f32 %v879, 0.6931472
    %v881 = vsub.f32 %v40, %v880
    %v882 = vsel %vm36, %v881, 0.0
    %883 = vadd.xlane.f32.xlu0 %v882
    %v884 = vpop.xlane.xlu0 %883
    %vm885 = vcmask 7168
    %886 = vst.msk [vmem:[%s2] sm:$0xff] %vm885, %v884
    // Predicated region
    $region18: #{tpu_custom_call.1} parent=1 // pred_check
      _
    $region19: #{tpu_custom_call.1} parent=1 // pred_check_branch
      %888 = sbr.rel (0) target = $region21
    $region20: #{tpu_custom_call.1} parent=1 // pred_region
      _
    $region21: #{tpu_custom_call.1} parent=1 // pred_fallthru
      _
    // Predicated region
    $region22: #{tpu_custom_call.1} parent=1 // pred_check
      _
    $region23: #{tpu_custom_call.1} parent=1 // pred_check_branch
      %890 = sbr.rel (0) target = $region25
    $region24: #{tpu_custom_call.1} parent=1 // pred_region
      _
    $region25: #{tpu_custom_call.1} parent=1 // pred_fallthru
      _
    %891 = vsyncpa [#allocation5], 1
    %892 = vsyncpa [#allocation7], 1

</llo_original>
